<compile_context>
chip_gen: v6e
topology: v6e:2x2x1
jax: 0.10.0
libtpu: 0.0.40
codegen_flags: <defaults>
</compile_context>

<pallas_src>
import jax
import jax.numpy as jnp
from jax import lax
from jax.experimental import pallas as pl
from jax.experimental.pallas import tpu as pltpu


def _round_up(v: int, m: int) -> int:
    return (v + m - 1) // m * m


def _make_auloss_kernel(alpha: float, t: float, n: int, blk: int, padded_n: int):
    needs_mask = padded_n != n
    alpha_is_two = alpha == 2.0

    def kernel(bi_ref, bj_ref, xi_ref, xj_ref, yi_ref, yj_ref, out_ref, acc_ref):
        p = pl.program_id(0)
        bi = bi_ref[p]
        bj = bj_ref[p]
        is_diag = bi == bj
        diag_f = is_diag.astype(jnp.float32)
        w = jnp.where(is_diag, jnp.float32(1.0), jnp.float32(2.0))

        @pl.when(p == 0)
        def _init():
            acc_ref[0] = 0.0
            acc_ref[1] = 0.0
            acc_ref[2] = 0.0

        xi = xi_ref[...]
        xj = xj_ref[...]
        yi = yi_ref[...]
        yj = yj_ref[...]

        xi32 = xi.astype(jnp.float32)
        xj32 = xj.astype(jnp.float32)
        yi32 = yi.astype(jnp.float32)
        yj32 = yj.astype(jnp.float32)

        # Per-row squared norms (f32), reused by both d2 blocks and the align term.
        sq_xi = jnp.sum(xi32 * xi32, axis=1, keepdims=True)  # (blk, 1)
        sq_xj = jnp.sum(xj32 * xj32, axis=1, keepdims=True)  # (blk, 1)
        sq_yi = jnp.sum(yi32 * yi32, axis=1, keepdims=True)
        sq_yj = jnp.sum(yj32 * yj32, axis=1, keepdims=True)

        if needs_mask:
            row_i = bi * blk + lax.broadcasted_iota(jnp.int32, (blk, 1), 0)
            row_j = bj * blk + lax.broadcasted_iota(jnp.int32, (1, blk), 1)
            valid_i = (row_i < n).astype(jnp.float32)  # (blk, 1)
            valid_j = (row_j < n).astype(jnp.float32)  # (1, blk)
            pair_mask = valid_i * valid_j
            diag_cnt = jnp.minimum(
                jnp.float32(blk), (n - bi * blk).astype(jnp.float32)
            )
        else:
            pair_mask = None
            diag_cnt = jnp.float32(blk)

        dn = (((1,), (1,)), ((), ()))  # contract feature dim of both operands

        def uniform_contrib(zi_nat, zj_nat, sq_i_col, sq_j_row):
            # (blk, blk) Gram on the MXU, no explicit transpose of the operands.
            gram = lax.dot_general(
                zi_nat, zj_nat, dimension_numbers=dn,
                preferred_element_type=jnp.float32,
            )
            d2 = jnp.maximum(sq_i_col + sq_j_row - 2.0 * gram, 0.0)
            e = jnp.exp(-t * d2)
            if pair_mask is not None:
                e = e * pair_mask
            # diagonal entries are exp(0) == 1 -> subtract their count on i==j blocks;
            # strictly off-diagonal blocks count twice (symmetric matrix, j >= i only).
            return w * jnp.sum(e) - diag_f * diag_cnt

        contrib_x = uniform_contrib(xi, xj, sq_xi, sq_xj.T)
        contrib_y = uniform_contrib(yi, yj, sq_yi, sq_yj.T)

        # Align term: only meaningful on diagonal block pairs (zeroed otherwise).
        cross = jnp.sum(xi32 * yi32, axis=1, keepdims=True)  # (blk, 1)
        sqn = jnp.maximum(sq_xi + sq_yi - 2.0 * cross, 0.0)
        if alpha_is_two:
            align_rows = sqn  # ||x - y||^2 directly, no sqrt/pow
        else:
            align_rows = jnp.where(
                sqn > 0.0,
                jnp.exp((0.5 * alpha) * jnp.log(jnp.maximum(sqn, 1e-30))),
                0.0,
            )
        align_part = diag_f * jnp.sum(align_rows)

        acc_ref[0] += align_part
        acc_ref[1] += contrib_x
        acc_ref[2] += contrib_y

        @pl.when(p == pl.num_programs(0) - 1)
        def _finalize():
            out_ref[0] = acc_ref[0]
            out_ref[1] = acc_ref[1]
            out_ref[2] = acc_ref[2]

    return kernel


def auloss_pallas(x, y, alpha=2, t=2, tau=1, block_rows=256):
    """Pallas TPU AULoss forward. x, y: [N, D]."""
    assert x.shape == y.shape and x.ndim == 2
    n, d = x.shape
    assert n >= 2, "uniform_loss needs at least 2 rows"

    # Row-block size: multiple of 8 (sublanes), capped at block_rows
    # (~256 keeps double-buffered blocks + two blk x blk tiles well inside
    #  v7x's 64 MiB VMEM; raise block_rows on v5e/v6e if desired).
    blk = min(int(block_rows), _round_up(n, 8))
    blk = _round_up(blk, 8)
    padded_n = _round_up(n, blk)
    nb = padded_n // blk

    if padded_n != n:
        pad = padded_n - n
        x = jnp.pad(x, ((0, pad), (0, 0)))
        y = jnp.pad(y, ((0, pad), (0, 0)))

    # Upper-triangular block-pair enumeration (bi <= bj): ~2x fewer Grams/exps.
    pairs = [(i, j) for i in range(nb) for j in range(i, nb)]
    bi_arr = jnp.array([p[0] for p in pairs], dtype=jnp.int32)
    bj_arr = jnp.array([p[1] for p in pairs], dtype=jnp.int32)
    num_pairs = len(pairs)

    kernel = _make_auloss_kernel(float(alpha), float(t), n, blk, padded_n)

    row_spec_i = pl.BlockSpec((blk, d), lambda p, bi, bj: (bi[p], 0))
    row_spec_j = pl.BlockSpec((blk, d), lambda p, bi, bj: (bj[p], 0))

    itemsize = jnp.dtype(x.dtype).itemsize
    cost = pl.CostEstimate(
        flops=int(2 * 2 * padded_n * padded_n * d),       # two Gram matrices
        transcendentals=int(2 * padded_n * padded_n),     # two N x N exp passes
        bytes_accessed=int(4 * num_pairs * blk * d * itemsize),
    )

    sums = pl.pallas_call(
        kernel,
        out_shape=jax.ShapeDtypeStruct((3,), jnp.float32),
        grid_spec=pltpu.PrefetchScalarGridSpec(
            num_scalar_prefetch=2,
            grid=(num_pairs,),
            in_specs=[row_spec_i, row_spec_j, row_spec_i, row_spec_j],
            out_specs=pl.BlockSpec(memory_space=pltpu.MemorySpace.SMEM),
            scratch_shapes=[pltpu.SMEM((3,), jnp.float32)],
        ),
        compiler_params=pltpu.CompilerParams(
            dimension_semantics=("arbitrary",),
            vmem_limit_bytes=48 * 1024 * 1024,
        ),
        cost_estimate=cost,
    )(bi_arr, bj_arr, x, x, y, y)

    # Trivial scalar epilogue (mean / log / combine) stays in JAX.
    align_sum, ux_sum, uy_sum = sums[0], sums[1], sums[2]
    inv_pairs = 1.0 / float(n * (n - 1))
    a_loss = align_sum / float(n)
    u_loss = jnp.log(ux_sum * inv_pairs) + jnp.log(uy_sum * inv_pairs)
    return a_loss + u_loss * float(tau)


def auloss_ref(x, y, alpha=2, t=2, tau=1):
    """Pure-JAX reference mirroring the PyTorch module."""
    x = x.astype(jnp.float32)
    y = y.astype(jnp.float32)
    a_loss = jnp.mean(jnp.sum((x - y) ** 2, axis=1) ** (alpha / 2.0))

    def uniform(z):
        nn = z.shape[0]
        d2 = jnp.sum((z[:, None, :] - z[None, :, :]) ** 2, axis=-1)
        iu = jnp.triu_indices(nn, k=1)
        return jnp.log(jnp.mean(jnp.exp(-t * d2[iu])))

    return a_loss + (uniform(x) + uniform(y)) * tau


if __name__ == "__main__":
    key = jax.random.PRNGKey(0)
    kx, ky = jax.random.split(key)

    # Small, unit-normalized embeddings (typical input for alignment/uniformity loss;
    # also keeps exp(-t * d2) away from underflow so the check is non-degenerate).
    N, D = 8, 32
    x = jax.random.normal(kx, (N, D), dtype=jnp.float32)
    y = jax.random.normal(ky, (N, D), dtype=jnp.float32)
    x = x / jnp.linalg.norm(x, axis=1, keepdims=True)
    y = y / jnp.linalg.norm(y, axis=1, keepdims=True)

    out = auloss_pallas(x, y, alpha=2, t=2, tau=1)
    jax.block_until_ready(out)
    ref = auloss_ref(x, y, alpha=2, t=2, tau=1)
    assert jnp.allclose(out, ref, rtol=1e-4, atol=1e-4), (out, ref)

    # Second config exercises the tiled triangular block path + row-padding masks.
    N2, D2 = 20, 32
    kx2, ky2 = jax.random.split(jax.random.PRNGKey(1))
    x2 = jax.random.normal(kx2, (N2, D2), dtype=jnp.float32)
    y2 = jax.random.normal(ky2, (N2, D2), dtype=jnp.float32)
    x2 = x2 / jnp.linalg.norm(x2, axis=1, keepdims=True)
    y2 = y2 / jnp.linalg.norm(y2, axis=1, keepdims=True)

    out2 = auloss_pallas(x2, y2, alpha=2, t=2, tau=1, block_rows=8)
    jax.block_until_ready(out2)
    ref2 = auloss_ref(x2, y2, alpha=2, t=2, tau=1)
    assert jnp.allclose(out2, ref2, rtol=1e-4, atol=1e-4), (out2, ref2)

    print("KERNEL_OK")
</pallas_src>

<mosaic_0001>
module attributes {stable_mosaic.version = 11 : i64} {
  func.func @kernel(%arg0: i32, %arg1: memref<1xi32, #tpu.memory_space<smem>>, %arg2: memref<1xi32, #tpu.memory_space<smem>>, %arg3: memref<8x32xf32, #tpu.memory_space<vmem>>, %arg4: memref<8x32xf32, #tpu.memory_space<vmem>>, %arg5: memref<8x32xf32, #tpu.memory_space<vmem>>, %arg6: memref<8x32xf32, #tpu.memory_space<vmem>>, %arg7: memref<3xf32, #tpu.memory_space<smem>>, %arg8: memref<3xf32, #tpu.memory_space<smem>>) attributes {dimension_semantics = [#tpu.dimension_semantics<arbitrary>], iteration_bounds = array<i64: 1>, scalar_prefetch = 2 : i64, scratch_operands = 1 : i64, tpu.core_type = #tpu.core_type<tc>, window_params = [{transform_indices = @transform_0, window_bounds = array<i64: 8, 32>}, {transform_indices = @transform_1, window_bounds = array<i64: 8, 32>}, {transform_indices = @transform_2, window_bounds = array<i64: 8, 32>}, {transform_indices = @transform_3, window_bounds = array<i64: 8, 32>}, {transform_indices = @transform_4, window_bounds = array<i64: 3>}]} {
    %0 = arith.index_cast %arg0 : i32 to index
    %1 = memref.load %arg1[%0] : memref<1xi32, #tpu.memory_space<smem>>
    %2 = arith.index_cast %arg0 : i32 to index
    %3 = memref.load %arg2[%2] : memref<1xi32, #tpu.memory_space<smem>>
    %4 = arith.cmpi eq, %1, %3 : i32
    %5 = arith.extui %4 : i1 to i32
    %6 = arith.sitofp %5 : i32 to f32
    %cst = arith.constant 1.000000e+00 : f32
    %cst_0 = arith.constant 2.000000e+00 : f32
    %7 = arith.select %4, %cst, %cst_0 : f32
    %c0_i32 = arith.constant 0 : i32
    %8 = arith.cmpi eq, %arg0, %c0_i32 : i32
    %9 = arith.extui %8 : i1 to i32
    %c0_i32_1 = arith.constant 0 : i32
    %10 = arith.cmpi ne, %9, %c0_i32_1 : i32
    scf.if %10 {
      %cst_35 = arith.constant 0.000000e+00 : f32
      %c0_36 = arith.constant 0 : index
      %93 = memref.load %arg8[%c0_36] : memref<3xf32, #tpu.memory_space<smem>>
      memref.store %cst_35, %arg8[%c0_36] : memref<3xf32, #tpu.memory_space<smem>>
      %cst_37 = arith.constant 0.000000e+00 : f32
      %c1_38 = arith.constant 1 : index
      %94 = memref.load %arg8[%c1_38] : memref<3xf32, #tpu.memory_space<smem>>
      memref.store %cst_37, %arg8[%c1_38] : memref<3xf32, #tpu.memory_space<smem>>
      %cst_39 = arith.constant 0.000000e+00 : f32
      %c2_40 = arith.constant 2 : index
      %95 = memref.load %arg8[%c2_40] : memref<3xf32, #tpu.memory_space<smem>>
      memref.store %cst_39, %arg8[%c2_40] : memref<3xf32, #tpu.memory_space<smem>>
    } else {
    }
    %c0 = arith.constant 0 : index
    %c0_2 = arith.constant 0 : index
    %11 = vector.load %arg3[%c0, %c0_2] : memref<8x32xf32, #tpu.memory_space<vmem>>, vector<8x32xf32>
    %c0_3 = arith.constant 0 : index
    %c0_4 = arith.constant 0 : index
    %12 = vector.load %arg4[%c0_3, %c0_4] : memref<8x32xf32, #tpu.memory_space<vmem>>, vector<8x32xf32>
    %c0_5 = arith.constant 0 : index
    %c0_6 = arith.constant 0 : index
    %13 = vector.load %arg5[%c0_5, %c0_6] : memref<8x32xf32, #tpu.memory_space<vmem>>, vector<8x32xf32>
    %c0_7 = arith.constant 0 : index
    %c0_8 = arith.constant 0 : index
    %14 = vector.load %arg6[%c0_7, %c0_8] : memref<8x32xf32, #tpu.memory_space<vmem>>, vector<8x32xf32>
    %15 = arith.mulf %11, %11 : vector<8x32xf32>
    %cst_9 = arith.constant dense<0.000000e+00> : vector<8xf32>
    %16 = vector.multi_reduction <add>, %15, %cst_9 [1] : vector<8x32xf32> to vector<8xf32>
    %17 = vector.shape_cast %16 : vector<8xf32> to vector<8x1xf32>
    %18 = arith.mulf %12, %12 : vector<8x32xf32>
    %cst_10 = arith.constant dense<0.000000e+00> : vector<8xf32>
    %19 = vector.multi_reduction <add>, %18, %cst_10 [1] : vector<8x32xf32> to vector<8xf32>
    %20 = vector.shape_cast %19 : vector<8xf32> to vector<8x1xf32>
    %21 = arith.mulf %13, %13 : vector<8x32xf32>
    %cst_11 = arith.constant dense<0.000000e+00> : vector<8xf32>
    %22 = vector.multi_reduction <add>, %21, %cst_11 [1] : vector<8x32xf32> to vector<8xf32>
    %23 = vector.shape_cast %22 : vector<8xf32> to vector<8x1xf32>
    %24 = arith.mulf %14, %14 : vector<8x32xf32>
    %cst_12 = arith.constant dense<0.000000e+00> : vector<8xf32>
    %25 = vector.multi_reduction <add>, %24, %cst_12 [1] : vector<8x32xf32> to vector<8xf32>
    %26 = vector.shape_cast %25 : vector<8xf32> to vector<8x1xf32>
    %27 = tpu.transpose %20, [1, 0] : vector<8x1xf32> -> vector<1x8xf32>
    %cst_13 = arith.constant dense<0.000000e+00> : vector<8x8xf32>
    %28 = tpu.matmul %11, %12, %cst_13 {dimension_numbers = #tpu.dot_dimension_numbers<[1], [1], [0], [0], [0, 0, 1, 0], [], []>} : vector<8x32xf32>, vector<8x32xf32>, vector<8x8xf32> -> vector<8x8xf32>
    %29 = vector.broadcast %17 : vector<8x1xf32> to vector<8x8xf32>
    %30 = vector.broadcast %27 : vector<1x8xf32> to vector<8x8xf32>
    %31 = arith.addf %29, %30 : vector<8x8xf32>
    %cst_14 = arith.constant 2.000000e+00 : f32
    %32 = vector.broadcast %cst_14 : f32 to vector<8x8xf32>
    %33 = arith.mulf %32, %28 : vector<8x8xf32>
    %34 = arith.subf %31, %33 : vector<8x8xf32>
    %cst_15 = arith.constant 0.000000e+00 : f32
    %35 = vector.broadcast %cst_15 : f32 to vector<8x8xf32>
    %36 = arith.maximumf %34, %35 : vector<8x8xf32>
    %cst_16 = arith.constant -2.000000e+00 : f32
    %37 = vector.broadcast %cst_16 : f32 to vector<8x8xf32>
    %38 = arith.mulf %37, %36 : vector<8x8xf32>
    %39 = math.exp %38 : vector<8x8xf32>
    %40 = vector.shape_cast %39 : vector<8x8xf32> to vector<1x8x8xf32>
    %cst_17 = arith.constant dense<0.000000e+00> : vector<1xf32>
    %41 = vector.multi_reduction <add>, %40, %cst_17 [1, 2] : vector<1x8x8xf32> to vector<1xf32>
    %42 = vector.shape_cast %41 : vector<1xf32> to vector<1x1x1xf32>
    %43 = vector.extract %42[0, 0, 0] : f32 from vector<1x1x1xf32>
    %44 = arith.mulf %7, %43 : f32
    %cst_18 = arith.constant 8.000000e+00 : f32
    %45 = arith.mulf %6, %cst_18 : f32
    %46 = arith.subf %44, %45 : f32
    %47 = tpu.transpose %26, [1, 0] : vector<8x1xf32> -> vector<1x8xf32>
    %cst_19 = arith.constant dense<0.000000e+00> : vector<8x8xf32>
    %48 = tpu.matmul %13, %14, %cst_19 {dimension_numbers = #tpu.dot_dimension_numbers<[1], [1], [0], [0], [0, 0, 1, 0], [], []>} : vector<8x32xf32>, vector<8x32xf32>, vector<8x8xf32> -> vector<8x8xf32>
    %49 = vector.broadcast %23 : vector<8x1xf32> to vector<8x8xf32>
    %50 = vector.broadcast %47 : vector<1x8xf32> to vector<8x8xf32>
    %51 = arith.addf %49, %50 : vector<8x8xf32>
    %cst_20 = arith.constant 2.000000e+00 : f32
    %52 = vector.broadcast %cst_20 : f32 to vector<8x8xf32>
    %53 = arith.mulf %52, %48 : vector<8x8xf32>
    %54 = arith.subf %51, %53 : vector<8x8xf32>
    %cst_21 = arith.constant 0.000000e+00 : f32
    %55 = vector.broadcast %cst_21 : f32 to vector<8x8xf32>
    %56 = arith.maximumf %54, %55 : vector<8x8xf32>
    %cst_22 = arith.constant -2.000000e+00 : f32
    %57 = vector.broadcast %cst_22 : f32 to vector<8x8xf32>
    %58 = arith.mulf %57, %56 : vector<8x8xf32>
    %59 = math.exp %58 : vector<8x8xf32>
    %60 = vector.shape_cast %59 : vector<8x8xf32> to vector<1x8x8xf32>
    %cst_23 = arith.constant dense<0.000000e+00> : vector<1xf32>
    %61 = vector.multi_reduction <add>, %60, %cst_23 [1, 2] : vector<1x8x8xf32> to vector<1xf32>
    %62 = vector.shape_cast %61 : vector<1xf32> to vector<1x1x1xf32>
    %63 = vector.extract %62[0, 0, 0] : f32 from vector<1x1x1xf32>
    %64 = arith.mulf %7, %63 : f32
    %cst_24 = arith.constant 8.000000e+00 : f32
    %65 = arith.mulf %6, %cst_24 : f32
    %66 = arith.subf %64, %65 : f32
    %67 = arith.mulf %11, %13 : vector<8x32xf32>
    %cst_25 = arith.constant dense<0.000000e+00> : vector<8xf32>
    %68 = vector.multi_reduction <add>, %67, %cst_25 [1] : vector<8x32xf32> to vector<8xf32>
    %69 = vector.shape_cast %68 : vector<8xf32> to vector<8x1xf32>
    %70 = arith.addf %17, %23 : vector<8x1xf32>
    %cst_26 = arith.constant 2.000000e+00 : f32
    %71 = vector.broadcast %cst_26 : f32 to vector<8x1xf32>
    %72 = arith.mulf %71, %69 : vector<8x1xf32>
    %73 = arith.subf %70, %72 : vector<8x1xf32>
    %cst_27 = arith.constant 0.000000e+00 : f32
    %74 = vector.broadcast %cst_27 : f32 to vector<8x1xf32>
    %75 = arith.maximumf %73, %74 : vector<8x1xf32>
    %76 = vector.shape_cast %75 : vector<8x1xf32> to vector<1x8x1xf32>
    %cst_28 = arith.constant dense<0.000000e+00> : vector<1xf32>
    %77 = vector.multi_reduction <add>, %76, %cst_28 [1, 2] : vector<1x8x1xf32> to vector<1xf32>
    %78 = vector.shape_cast %77 : vector<1xf32> to vector<1x1x1xf32>
    %79 = vector.extract %78[0, 0, 0] : f32 from vector<1x1x1xf32>
    %80 = arith.mulf %6, %79 : f32
    %c0_29 = arith.constant 0 : index
    %81 = memref.load %arg8[%c0_29] : memref<3xf32, #tpu.memory_space<smem>>
    %82 = arith.addf %81, %80 : f32
    %c0_30 = arith.constant 0 : index
    %83 = memref.load %arg8[%c0_30] : memref<3xf32, #tpu.memory_space<smem>>
    memref.store %82, %arg8[%c0_30] : memref<3xf32, #tpu.memory_space<smem>>
    %c1 = arith.constant 1 : index
    %84 = memref.load %arg8[%c1] : memref<3xf32, #tpu.memory_space<smem>>
    %85 = arith.addf %84, %46 : f32
    %c1_31 = arith.constant 1 : index
    %86 = memref.load %arg8[%c1_31] : memref<3xf32, #tpu.memory_space<smem>>
    memref.store %85, %arg8[%c1_31] : memref<3xf32, #tpu.memory_space<smem>>
    %c2 = arith.constant 2 : index
    %87 = memref.load %arg8[%c2] : memref<3xf32, #tpu.memory_space<smem>>
    %88 = arith.addf %87, %66 : f32
    %c2_32 = arith.constant 2 : index
    %89 = memref.load %arg8[%c2_32] : memref<3xf32, #tpu.memory_space<smem>>
    memref.store %88, %arg8[%c2_32] : memref<3xf32, #tpu.memory_space<smem>>
    %c0_i32_33 = arith.constant 0 : i32
    %90 = arith.cmpi eq, %arg0, %c0_i32_33 : i32
    %91 = arith.extui %90 : i1 to i32
    %c0_i32_34 = arith.constant 0 : i32
    %92 = arith.cmpi ne, %91, %c0_i32_34 : i32
    scf.if %92 {
      %c0_35 = arith.constant 0 : index
      %93 = memref.load %arg8[%c0_35] : memref<3xf32, #tpu.memory_space<smem>>
      %c0_36 = arith.constant 0 : index
      %94 = memref.load %arg7[%c0_36] : memref<3xf32, #tpu.memory_space<smem>>
      memref.store %93, %arg7[%c0_36] : memref<3xf32, #tpu.memory_space<smem>>
      %c1_37 = arith.constant 1 : index
      %95 = memref.load %arg8[%c1_37] : memref<3xf32, #tpu.memory_space<smem>>
      %c1_38 = arith.constant 1 : index
      %96 = memref.load %arg7[%c1_38] : memref<3xf32, #tpu.memory_space<smem>>
      memref.store %95, %arg7[%c1_38] : memref<3xf32, #tpu.memory_space<smem>>
      %c2_39 = arith.constant 2 : index
      %97 = memref.load %arg8[%c2_39] : memref<3xf32, #tpu.memory_space<smem>>
      %c2_40 = arith.constant 2 : index
      %98 = memref.load %arg7[%c2_40] : memref<3xf32, #tpu.memory_space<smem>>
      memref.store %97, %arg7[%c2_40] : memref<3xf32, #tpu.memory_space<smem>>
    } else {
    }
    return
  }
  func.func @transform_0(%arg0: i32, %arg1: memref<1xi32, #tpu.memory_space<smem>>, %arg2: memref<1xi32, #tpu.memory_space<smem>>) -> (i32, i32) {
    %0 = arith.index_cast %arg0 : i32 to index
    %1 = memref.load %arg1[%0] : memref<1xi32, #tpu.memory_space<smem>>
    %c0_i32 = arith.constant 0 : i32
    %c0_i32_0 = arith.constant 0 : i32
    return %1, %c0_i32 : i32, i32
  }
  func.func @transform_1(%arg0: i32, %arg1: memref<1xi32, #tpu.memory_space<smem>>, %arg2: memref<1xi32, #tpu.memory_space<smem>>) -> (i32, i32) {
    %0 = arith.index_cast %arg0 : i32 to index
    %1 = memref.load %arg2[%0] : memref<1xi32, #tpu.memory_space<smem>>
    %c0_i32 = arith.constant 0 : i32
    %c0_i32_0 = arith.constant 0 : i32
    return %1, %c0_i32 : i32, i32
  }
  func.func @transform_2(%arg0: i32, %arg1: memref<1xi32, #tpu.memory_space<smem>>, %arg2: memref<1xi32, #tpu.memory_space<smem>>) -> (i32, i32) {
    %0 = arith.index_cast %arg0 : i32 to index
    %1 = memref.load %arg1[%0] : memref<1xi32, #tpu.memory_space<smem>>
    %c0_i32 = arith.constant 0 : i32
    %c0_i32_0 = arith.constant 0 : i32
    return %1, %c0_i32 : i32, i32
  }
  func.func @transform_3(%arg0: i32, %arg1: memref<1xi32, #tpu.memory_space<smem>>, %arg2: memref<1xi32, #tpu.memory_space<smem>>) -> (i32, i32) {
    %0 = arith.index_cast %arg0 : i32 to index
    %1 = memref.load %arg2[%0] : memref<1xi32, #tpu.memory_space<smem>>
    %c0_i32 = arith.constant 0 : i32
    %c0_i32_0 = arith.constant 0 : i32
    return %1, %c0_i32 : i32, i32
  }
  func.func @transform_4(%arg0: i32, %arg1: memref<1xi32, #tpu.memory_space<smem>>, %arg2: memref<1xi32, #tpu.memory_space<smem>>) -> i32 {
    %c0_i32 = arith.constant 0 : i32
    %c0_i32_0 = arith.constant 0 : i32
    return %c0_i32 : i32
  }
}

</mosaic_0001>

<llo_original>
// kernel: tpu_custom_call.1
$region0: #{tpu_custom_call.1}
  #allocation0 [shape = 'u32[]', space=smem, size = 0x4, offset = 0x4, fixed_abs, tag = 'smem constant byte address 0x4 - core index']
  #allocation1 [shape = 'u32[144,128]{1,0:T(1,128)}', space=vmem, size = 0x12000, scoped, tag = 'internal scratch']
  #allocation2 [shape = 'f32[3]{0:T(128)}', space=smem, size = 0x200, scoped, tag = 'scratch operand']
  #allocation3 [shape = 's32[1]{0}', space=sflag, size = 0x4, scoped, tag = 'scoped memory for tpu_custom_call.1']
  #allocation4 [shape = 's32[1]{0:T(128)S(6)}', space=smem, size = 0x200, scoped, tag = 'prefetched SMEM operand 0']
  #allocation5 [shape = 's32[1]{0:T(128)S(6)}', space=smem, size = 0x200, scoped, tag = 'prefetched SMEM operand 1']
  %s0 = inlined_call_operand.<no memory space> [shape: s32[1], index: 0, kind: input, shape index: {}]
  %s1 = inlined_call_operand.<no memory space> [shape: s32[1], index: 1, kind: input, shape index: {}]
  %s2 = inlined_call_operand.hbm [shape: f32[8,32], index: 2, kind: input, shape index: {}]
  %s3 = inlined_call_operand.hbm [shape: f32[8,32], index: 3, kind: input, shape index: {}]
  %s4 = inlined_call_operand.hbm [shape: f32[8,32], index: 4, kind: input, shape index: {}]
  %s5 = inlined_call_operand.vmem [shape: f32[8,32], index: 5, kind: input, shape index: {}]
  %s6 = inlined_call_operand.hbm [shape: f32[3], index: 6, kind: output, shape index: {}]
  %s7 = sld [smem:[#allocation0]]
  $region46: #{tpu_custom_call.1} parent=0
    _
  %s9 = ssub.s32 1, %s7
  %s10 = scalar_select 0, %s9, %s7
  %11 = sst [smem:[#allocation4]] %s0
  %12 = sst [smem:[#allocation5]] %s1
  $region1: #{tpu_custom_call.1} parent=0
    #allocation6 [shape = 'u8[4096]{0}', space=vmem, size = 0x1000, scoped, tag = 'input window, operand 2, single buffered']
    #allocation7 [shape = 's32[1]{0}', space=sflag, size = 0x4, scoped, tag = 'scoped memory for tpu_custom_call.1']
    #allocation8 [shape = 's32[1]{0}', space=sflag, size = 0x4, scoped, tag = 'scoped memory for tpu_custom_call.1']
    #allocation9 [shape = 'u8[4096]{0}', space=vmem, size = 0x1000, scoped, tag = 'input window, operand 3, single buffered']
    #allocation10 [shape = 's32[1]{0}', space=sflag, size = 0x4, scoped, tag = 'scoped memory for tpu_custom_call.1']
    #allocation11 [shape = 'u8[4096]{0}', space=vmem, size = 0x1000, scoped, tag = 'input window, operand 4, single buffered']
    #allocation12 [shape = 'u8[512]{0}', space=smem, size = 0x200, scoped, tag = 'output window, operand 0, single buffered']
    %13 = vsyncpa [#allocation7], 0
    %14 = vsyncpa [#allocation10], 0
    %15 = vsyncpa [#allocation8], 0
    // Predicated region
    $region2: #{tpu_custom_call.1} parent=1 // pred_check
      _
    $region3: #{tpu_custom_call.1} parent=1 // pred_check_branch
      %17 = sbr.rel (0) target = $region5
    $region4: #{tpu_custom_call.1} parent=1 // pred_region
      %s18 = sld [smem:[#allocation4]]
      %s20 = ssub.s32 128, 128
      %21 = vsyncadd [#allocation7], %s20
      %s22 = smul.addr %s18, 128
      %s23 = scalar_lea.hbm %s2, %s22
      %s25 = sshll.u32 [#allocation6], 4
      %s26 = int_to_ptr.vmem [resolvable:$true] %s25
      %28 = dma.hbm_to_vmem [thread:$0]  %s23, 128, %s26, [#allocation7]
    $region5: #{tpu_custom_call.1} parent=1 // pred_fallthru
      _
    // Predicated region
    $region6: #{tpu_custom_call.1} parent=1 // pred_check
      _
    $region7: #{tpu_custom_call.1} parent=1 // pred_check_branch
      %30 = sbr.rel (0) target = $region9
    $region8: #{tpu_custom_call.1} parent=1 // pred_region
      %s31 = sld [smem:[#allocation5]]
      %s33 = ssub.s32 128, 128
      %34 = vsyncadd [#allocation10], %s33
      %s35 = smul.addr %s31, 128
      %s36 = scalar_lea.hbm %s3, %s35
      %s38 = sshll.u32 [#allocation9], 4
      %s39 = int_to_ptr.vmem [resolvable:$true] %s38
      %41 = dma.hbm_to_vmem [thread:$0]  %s36, 128, %s39, [#allocation10]
    $region9: #{tpu_custom_call.1} parent=1 // pred_fallthru
      _
    // Predicated region
    $region10: #{tpu_custom_call.1} parent=1 // pred_check
      _
    $region11: #{tpu_custom_call.1} parent=1 // pred_check_branch
      %43 = sbr.rel (0) target = $region13
    $region12: #{tpu_custom_call.1} parent=1 // pred_region
      %s44 = sld [smem:[#allocation4]]
      %s46 = ssub.s32 128, 128
      %47 = vsyncadd [#allocation10], %s46
      %s48 = smul.addr %s44, 128
      %s49 = scalar_lea.hbm %s4, %s48
      %s51 = sshll.u32 [#allocation11], 4
      %s52 = int_to_ptr.vmem [resolvable:$true] %s51
      %54 = dma.hbm_to_vmem [thread:$0]  %s49, 128, %s52, [#allocation10]
    $region13: #{tpu_custom_call.1} parent=1 // pred_fallthru
      _
    // Predicated region
    $region14: #{tpu_custom_call.1} parent=1 // pred_check
      _
    $region15: #{tpu_custom_call.1} parent=1 // pred_check_branch
      %56 = sbr.rel (0) target = $region17
    $region16: #{tpu_custom_call.1} parent=1 // pred_region
      %s57 = sld [smem:[#allocation5]]
      %p58 = scmp.lt.s32.totalorder %s57, 0
      %s59 = scalar_select %p58, %s57, 0
      %s60 = smul.addr %s59, 8
      %s61 = scalar_lea.vmem %s5, %s60
      %s62 = sld [smem:[#allocation5]]
    $region17: #{tpu_custom_call.1} parent=1 // pred_fallthru
      _
    // Predicated region
    $region18: #{tpu_custom_call.1} parent=1 // pred_check
      _
    $region19: #{tpu_custom_call.1} parent=1 // pred_check_branch
      %64 = sbr.rel (0) target = $region21
    $region20: #{tpu_custom_call.1} parent=1 // pred_region
      %65 = dma.done [#allocation7], 128
    $region21: #{tpu_custom_call.1} parent=1 // pred_fallthru
      _
    // Predicated region
    $region22: #{tpu_custom_call.1} parent=1 // pred_check
      _
    $region23: #{tpu_custom_call.1} parent=1 // pred_check_branch
      %67 = sbr.rel (0) target = $region25
    $region24: #{tpu_custom_call.1} parent=1 // pred_region
      %68 = dma.done [#allocation10], 128
    $region25: #{tpu_custom_call.1} parent=1 // pred_fallthru
      _
    // Predicated region
    $region26: #{tpu_custom_call.1} parent=1 // pred_check
      _
    $region27: #{tpu_custom_call.1} parent=1 // pred_check_branch
      %70 = sbr.rel (0) target = $region29
    $region28: #{tpu_custom_call.1} parent=1 // pred_region
      %71 = dma.done [#allocation10], 128
    $region29: #{tpu_custom_call.1} parent=1 // pred_fallthru
      _
    %s72 = sld [smem:[#allocation5]]
    %p73 = scmp.lt.s32.totalorder %s72, 0
    %s74 = scalar_select %p73, %s72, 0
    %s75 = smul.addr %s74, 8
    %s76 = scalar_lea.vmem %s5, %s75
    %s77 = sld [smem:[#allocation4]]
    %s78 = sld [smem:[#allocation5]]
    %s79 = sld [smem:[#allocation4]]
    %s80 = sld [smem:[#allocation5]]
    %p81 = scmp.lt.s32.totalorder %s80, 0
    %s82 = scalar_select %p81, %s80, 0
    %s83 = smul.addr %s82, 8
    %s84 = scalar_lea.vmem %s5, %s83
    %s85 = sld [smem:[#allocation5]]
    %s86 = sld [smem:[#allocation4]]
    %s87 = sld [smem:[#allocation5]]
    %p88 = scmp.eq.s32.totalorder %s86, %s87
    %s89 = scalar_select %p88, 1, 0
    %s90 = scvt.s32.f32 %s89
    %s91 = scalar_select %p88, 1.0, 2.0
    %p92 = scmp.eq.s32.totalorder 0, 0
    // Predicated region
    $region30: #{tpu_custom_call.1} parent=1 // pred_check
      %p93 = pneg %p92
    $region31: #{tpu_custom_call.1} parent=1 // pred_check_branch
      %95 = sbr.rel (%p93) target = $region33
    $region32: #{tpu_custom_call.1} parent=1 // pred_region
      %s96 = scalar_lea.smem [#allocation2], 0
      %97 = sst [smem:[%s96]] 0.0
      %s98 = scalar_lea.smem [#allocation2], 1
      %99 = sst [smem:[%s98]] 0.0
      %s100 = scalar_lea.smem [#allocation2], 2
      %101 = sst [smem:[%s100]] 0.0
    $region33: #{tpu_custom_call.1} parent=1 // pred_fallthru
      _
    %v102 = vld [vmem:[#allocation6] sm:$0xff]
    %v103 = vld [vmem:[#allocation9] sm:$0xff]
    %v104 = vld [vmem:[#allocation11] sm:$0xff]
    %v105 = vld [vmem:[%s84] sm:$0xff]
    %v106 = vmul.f32 %v102, %v102
    %vm107 = vcmask 261120
    %v108 = vsel %vm107, %v106, 0.0
    %109 = vadd.xlane.f32.xlu0 %v108
    %v110 = vpop.xlane.xlu0 %109
    %v111 = vmul.f32 %v103, %v103
    %v112 = vsel %vm107, %v111, 0.0
    %113 = vadd.xlane.f32.xlu0 %v112
    %v114 = vpop.xlane.xlu0 %113
    %v115 = vmul.f32 %v104, %v104
    %v116 = vsel %vm107, %v115, 0.0
    %117 = vadd.xlane.f32.xlu0 %v116
    %v118 = vpop.xlane.xlu0 %117
    %v119 = vmul.f32 %v105, %v105
    %v120 = vsel %vm107, %v119, 0.0
    %121 = vadd.xlane.f32.xlu0 %v120
    %v122 = vpop.xlane.xlu0 %121
    %123 = vxpose.xlu0.b32.start [1/16] %v114, 128
    %124 = vxpose.xlu0.b32.cont [2/16] 0.0, 128
    %125 = vxpose.xlu0.b32.cont [3/16] 0.0, 128
    %126 = vxpose.xlu0.b32.cont [4/16] 0.0, 128
    %127 = vxpose.xlu0.b32.cont [5/16] 0.0, 128
    %128 = vxpose.xlu0.b32.cont [6/16] 0.0, 128
    %129 = vxpose.xlu0.b32.cont [7/16] 0.0, 128
    %130 = vxpose.xlu0.b32.cont [8/16] 0.0, 128
    %131 = vxpose.xlu0.b32.cont [9/16] 0.0, 128
    %132 = vxpose.xlu0.b32.cont [10/16] 0.0, 128
    %133 = vxpose.xlu0.b32.cont [11/16] 0.0, 128
    %134 = vxpose.xlu0.b32.cont [12/16] 0.0, 128
    %135 = vxpose.xlu0.b32.cont [13/16] 0.0, 128
    %136 = vxpose.xlu0.b32.cont [14/16] 0.0, 128
    %137 = vxpose.xlu0.b32.cont [15/16] 0.0, 128
    %138 = vxpose.xlu0.b32.end [16/16] 0.0, 128
    %v139 = vpop.trf.xlu0
    %v140 = vpop.trf.xlu0
    %v141 = vpop.trf.xlu0
    %v142 = vpop.trf.xlu0
    %v143 = vpop.trf.xlu0
    %v144 = vpop.trf.xlu0
    %v145 = vpop.trf.xlu0
    %v146 = vpop.trf.xlu0
    %v147 = vpop.trf.xlu0
    %v148 = vpop.trf.xlu0
    %v149 = vpop.trf.xlu0
    %v150 = vpop.trf.xlu0
    %v151 = vpop.trf.xlu0
    %v152 = vpop.trf.xlu0
    %v153 = vpop.trf.xlu0
    %v154 = vpop.trf.xlu0
    %v156 = vsel %vm107, %v102, 0
    %v159 = vsel %vm107, %v103, 0
    %161 = vmatprep.subr.mxu0 0.0
    %162 = vmatpush1.xpose.msra.mxu0 0.0
    %163 = vmatprep.subr.mxu0 0.0
    %164 = vmatpush1.xpose.msra.mxu0 0.0
    %165 = vmatprep.subr.mxu0 0.0
    %166 = vmatpush1.xpose.msra.mxu0 0.0
    %167 = vmatprep.subr.mxu0 0.0
    %168 = vmatpush1.xpose.msra.mxu0 0.0
    %169 = vmatprep.subr.mxu0 0.0
    %170 = vmatpush1.xpose.msra.mxu0 0.0
    %171 = vmatprep.subr.mxu0 0.0
    %172 = vmatpush1.xpose.msra.mxu0 0.0
    %173 = vmatprep.subr.mxu0 0.0
    %174 = vmatpush1.xpose.msra.mxu0 0.0
    %175 = vmatprep.subr.mxu0 0.0
    %176 = vmatpush1.xpose.msra.mxu0 0.0
    %177 = vmatprep.subr.mxu0 0.0
    %178 = vmatpush1.xpose.msra.mxu0 0.0
    %179 = vmatprep.subr.mxu0 0.0
    %180 = vmatpush1.xpose.msra.mxu0 0.0
    %181 = vmatprep.subr.mxu0 0.0
    %182 = vmatpush1.xpose.msra.mxu0 0.0
    %183 = vmatprep.subr.mxu0 0.0
    %184 = vmatpush1.xpose.msra.mxu0 0.0
    %185 = vmatprep.subr.mxu0 0.0
    %186 = vmatpush1.xpose.msra.mxu0 0.0
    %187 = vmatprep.subr.mxu0 0.0
    %188 = vmatpush1.xpose.msra.mxu0 0.0
    %189 = vmatprep.subr.mxu0 0.0
    %190 = vmatpush1.xpose.msra.mxu0 0.0
    %191 = vmatprep.subr.mxu0 0.0
    %192 = vmatpush1.xpose.msra.mxu0 %v159
    %193 = vmatprep.subr.mxu0 0.0
    %194 = vmatpush2.xpose.msra.mxu0 0.0
    %195 = vmatprep.subr.mxu0 0.0
    %196 = vmatpush2.xpose.msra.mxu0 0.0
    %197 = vmatprep.subr.mxu0 0.0
    %198 = vmatpush2.xpose.msra.mxu0 0.0
    %199 = vmatprep.subr.mxu0 0.0
    %200 = vmatpush2.xpose.msra.mxu0 0.0
    %201 = vmatprep.subr.mxu0 0.0
    %202 = vmatpush2.xpose.msra.mxu0 0.0
    %203 = vmatprep.subr.mxu0 0.0
    %204 = vmatpush2.xpose.msra.mxu0 0.0
    %205 = vmatprep.subr.mxu0 0.0
    %206 = vmatpush2.xpose.msra.mxu0 0.0
    %207 = vmatprep.subr.mxu0 0.0
    %208 = vmatpush2.xpose.msra.mxu0 0.0
    %209 = vmatprep.subr.mxu0 0.0
    %210 = vmatpush2.xpose.msra.mxu0 0.0
    %211 = vmatprep.subr.mxu0 0.0
    %212 = vmatpush2.xpose.msra.mxu0 0.0
    %213 = vmatprep.subr.mxu0 0.0
    %214 = vmatpush2.xpose.msra.mxu0 0.0
    %215 = vmatprep.subr.mxu0 0.0
    %216 = vmatpush2.xpose.msra.mxu0 0.0
    %217 = vmatprep.subr.mxu0 0.0
    %218 = vmatpush2.xpose.msra.mxu0 0.0
    %219 = vmatprep.subr.mxu0 0.0
    %220 = vmatpush2.xpose.msra.mxu0 0.0
    %221 = vmatprep.subr.mxu0 0.0
    %222 = vmatpush2.xpose.msra.mxu0 0.0
    %223 = vmatprep.subr.mxu0 0.0
    %224 = vmatpush2.xpose.msra.mxu0 0.0
    %225 = vmatprep.mubr.f32.mxu0 0.0
    %226 = vmatmul.mubr.f32.gmra.mxu0 %v156
    %v227 = vpop.f32.mrf.mxu0
    %v228 = vadd.f32 0.0, %v227
    %v229 = vpop.f32.mrf.mxu0
    %230 = vdwg.mxu0
    %v231 = vlaneseq
    %v232 = vshrl.u32 %v231, 7
    %v233 = vsub.s32 0, %v232
    %v234 = vrot.slane %v139, %v233
    %v235 = vadd.f32 %v110, %v234
    %v236 = vmul.f32 %v228, 2.0
    %v237 = vsub.f32 %v235, %v236
    %v238 = vmax.f32 %v237, 0.0
    %v239 = vmul.f32 %v238, -2.0
    %v240 = vmul.f32 %v239, 1.442695
    %v241 = vpow.pop %v240
    %vm242 = vcmask 64512
    %v243 = vsel %vm242, %v241, 0.0
    %244 = vadd.xlane.f32.xlu0 %v243
    %v245 = vpop.xlane.xlu0 %244
    %v246 = vrot.slane %v245, 4
    %v247 = vadd.f32 %v245, %v246
    %v248 = vrot.slane %v247, 2
    %v249 = vadd.f32 %v247, %v248
    %v250 = vrot.slane %v249, 1
    %v251 = vadd.f32 %v249, %v250
    %s252 = vtos %v251
    %s253 = smul.f32 %s91, %s252
    %s254 = smul.f32 %s90, 8.0
    %s255 = ssub.f32 %s253, %s254
    %256 = vxpose.xlu0.b32.start [1/16] %v122, 128
    %257 = vxpose.xlu0.b32.cont [2/16] 0.0, 128
    %258 = vxpose.xlu0.b32.cont [3/16] 0.0, 128
    %259 = vxpose.xlu0.b32.cont [4/16] 0.0, 128
    %260 = vxpose.xlu0.b32.cont [5/16] 0.0, 128
    %261 = vxpose.xlu0.b32.cont [6/16] 0.0, 128
    %262 = vxpose.xlu0.b32.cont [7/16] 0.0, 128
    %263 = vxpose.xlu0.b32.cont [8/16] 0.0, 128
    %264 = vxpose.xlu0.b32.cont [9/16] 0.0, 128
    %265 = vxpose.xlu0.b32.cont [10/16] 0.0, 128
    %266 = vxpose.xlu0.b32.cont [11/16] 0.0, 128
    %267 = vxpose.xlu0.b32.cont [12/16] 0.0, 128
    %268 = vxpose.xlu0.b32.cont [13/16] 0.0, 128
    %269 = vxpose.xlu0.b32.cont [14/16] 0.0, 128
    %270 = vxpose.xlu0.b32.cont [15/16] 0.0, 128
    %271 = vxpose.xlu0.b32.end [16/16] 0.0, 128
    %v272 = vpop.trf.xlu0
    %v273 = vpop.trf.xlu0
    %v274 = vpop.trf.xlu0
    %v275 = vpop.trf.xlu0
    %v276 = vpop.trf.xlu0
    %v277 = vpop.trf.xlu0
    %v278 = vpop.trf.xlu0
    %v279 = vpop.trf.xlu0
    %v280 = vpop.trf.xlu0
    %v281 = vpop.trf.xlu0
    %v282 = vpop.trf.xlu0
    %v283 = vpop.trf.xlu0
    %v284 = vpop.trf.xlu0
    %v285 = vpop.trf.xlu0
    %v286 = vpop.trf.xlu0
    %v287 = vpop.trf.xlu0
    %v289 = vsel %vm107, %v104, 0
    %v292 = vsel %vm107, %v105, 0
    %294 = vmatprep.subr.mxu0 0.0
    %295 = vmatpush1.xpose.msra.mxu0 0.0
    %296 = vmatprep.subr.mxu0 0.0
    %297 = vmatpush1.xpose.msra.mxu0 0.0
    %298 = vmatprep.subr.mxu0 0.0
    %299 = vmatpush1.xpose.msra.mxu0 0.0
    %300 = vmatprep.subr.mxu0 0.0
    %301 = vmatpush1.xpose.msra.mxu0 0.0
    %302 = vmatprep.subr.mxu0 0.0
    %303 = vmatpush1.xpose.msra.mxu0 0.0
    %304 = vmatprep.subr.mxu0 0.0
    %305 = vmatpush1.xpose.msra.mxu0 0.0
    %306 = vmatprep.subr.mxu0 0.0
    %307 = vmatpush1.xpose.msra.mxu0 0.0
    %308 = vmatprep.subr.mxu0 0.0
    %309 = vmatpush1.xpose.msra.mxu0 0.0
    %310 = vmatprep.subr.mxu0 0.0
    %311 = vmatpush1.xpose.msra.mxu0 0.0
    %312 = vmatprep.subr.mxu0 0.0
    %313 = vmatpush1.xpose.msra.mxu0 0.0
    %314 = vmatprep.subr.mxu0 0.0
    %315 = vmatpush1.xpose.msra.mxu0 0.0
    %316 = vmatprep.subr.mxu0 0.0
    %317 = vmatpush1.xpose.msra.mxu0 0.0
    %318 = vmatprep.subr.mxu0 0.0
    %319 = vmatpush1.xpose.msra.mxu0 0.0
    %320 = vmatprep.subr.mxu0 0.0
    %321 = vmatpush1.xpose.msra.mxu0 0.0
    %322 = vmatprep.subr.mxu0 0.0
    %323 = vmatpush1.xpose.msra.mxu0 0.0
    %324 = vmatprep.subr.mxu0 0.0
    %325 = vmatpush1.xpose.msra.mxu0 %v292
    %326 = vmatprep.subr.mxu0 0.0
    %327 = vmatpush2.xpose.msra.mxu0 0.0
    %328 = vmatprep.subr.mxu0 0.0
    %329 = vmatpush2.xpose.msra.mxu0 0.0
    %330 = vmatprep.subr.mxu0 0.0
    %331 = vmatpush2.xpose.msra.mxu0 0.0
    %332 = vmatprep.subr.mxu0 0.0
    %333 = vmatpush2.xpose.msra.mxu0 0.0
    %334 = vmatprep.subr.mxu0 0.0
    %335 = vmatpush2.xpose.msra.mxu0 0.0
    %336 = vmatprep.subr.mxu0 0.0
    %337 = vmatpush2.xpose.msra.mxu0 0.0
    %338 = vmatprep.subr.mxu0 0.0
    %339 = vmatpush2.xpose.msra.mxu0 0.0
    %340 = vmatprep.subr.mxu0 0.0
    %341 = vmatpush2.xpose.msra.mxu0 0.0
    %342 = vmatprep.subr.mxu0 0.0
    %343 = vmatpush2.xpose.msra.mxu0 0.0
    %344 = vmatprep.subr.mxu0 0.0
    %345 = vmatpush2.xpose.msra.mxu0 0.0
    %346 = vmatprep.subr.mxu0 0.0
    %347 = vmatpush2.xpose.msra.mxu0 0.0
    %348 = vmatprep.subr.mxu0 0.0
    %349 = vmatpush2.xpose.msra.mxu0 0.0
    %350 = vmatprep.subr.mxu0 0.0
    %351 = vmatpush2.xpose.msra.mxu0 0.0
    %352 = vmatprep.subr.mxu0 0.0
    %353 = vmatpush2.xpose.msra.mxu0 0.0
    %354 = vmatprep.subr.mxu0 0.0
    %355 = vmatpush2.xpose.msra.mxu0 0.0
    %356 = vmatprep.subr.mxu0 0.0
    %357 = vmatpush2.xpose.msra.mxu0 0.0
    %358 = vmatprep.mubr.f32.mxu0 0.0
    %359 = vmatmul.mubr.f32.gmra.mxu0 %v289
    %v360 = vpop.f32.mrf.mxu0
    %v361 = vadd.f32 0.0, %v360
    %v362 = vpop.f32.mrf.mxu0
    %363 = vdwg.mxu0
    %v364 = vlaneseq
    %v365 = vshrl.u32 %v364, 7
    %v366 = vsub.s32 0, %v365
    %v367 = vrot.slane %v272, %v366
    %v368 = vadd.f32 %v118, %v367
    %v369 = vmul.f32 %v361, 2.0
    %v370 = vsub.f32 %v368, %v369
    %v371 = vmax.f32 %v370, 0.0
    %v372 = vmul.f32 %v371, -2.0
    %v373 = vmul.f32 %v372, 1.442695
    %v374 = vpow.pop %v373
    %v375 = vsel %vm242, %v374, 0.0
    %376 = vadd.xlane.f32.xlu0 %v375
    %v377 = vpop.xlane.xlu0 %376
    %v378 = vrot.slane %v377, 4
    %v379 = vadd.f32 %v377, %v378
    %v380 = vrot.slane %v379, 2
    %v381 = vadd.f32 %v379, %v380
    %v382 = vrot.slane %v381, 1
    %v383 = vadd.f32 %v381, %v382
    %s384 = vtos %v383
    %s385 = smul.f32 %s91, %s384
    %s386 = ssub.f32 %s385, %s254
    %v387 = vmul.f32 %v102, %v104
    %v388 = vsel %vm107, %v387, 0.0
    %389 = vadd.xlane.f32.xlu0 %v388
    %v390 = vpop.xlane.xlu0 %389
    %v391 = vadd.f32 %v110, %v118
    %v392 = vmul.f32 %v390, 2.0
    %v393 = vsub.f32 %v391, %v392
    %v394 = vmax.f32 %v393, 0.0
    %vm395 = vcmask 7168
    %v396 = vsel %vm395, %v394, 0.0
    %397 = vadd.xlane.f32.xlu0 %v396
    %v398 = vpop.xlane.xlu0 %397
    %v399 = vrot.slane %v398, 4
    %v400 = vadd.f32 %v398, %v399
    %v401 = vrot.slane %v400, 2
    %v402 = vadd.f32 %v400, %v401
    %v403 = vrot.slane %v402, 1
    %v404 = vadd.f32 %v402, %v403
    %s405 = vtos %v404
    %s406 = smul.f32 %s90, %s405
    %s407 = sld [smem:[#allocation2]]
    %s408 = sadd.f32 %s407, %s406
    %s409 = scalar_lea.smem [#allocation2], 0
    %410 = sst [smem:[%s409]] %s408
    %s411 = sld [smem:[#allocation2 + $0x1]]
    %s412 = sadd.f32 %s411, %s255
    %s413 = scalar_lea.smem [#allocation2], 1
    %414 = sst [smem:[%s413]] %s412
    %s415 = sld [smem:[#allocation2 + $0x2]]
    %s416 = sadd.f32 %s415, %s386
    %s417 = scalar_lea.smem [#allocation2], 2
    %418 = sst [smem:[%s417]] %s416
    // Predicated region
    $region34: #{tpu_custom_call.1} parent=1 // pred_check
      %p419 = pneg %p92
    $region35: #{tpu_custom_call.1} parent=1 // pred_check_branch
      %421 = sbr.rel (%p419) target = $region37
    $region36: #{tpu_custom_call.1} parent=1 // pred_region
      %s422 = sld [smem:[#allocation2]]
      %s423 = scalar_lea.smem [#allocation12], 0
      %424 = sst [smem:[%s423]] %s422
      %s425 = sld [smem:[#allocation2 + $0x1]]
      %s426 = scalar_lea.smem [#allocation12], 1
      %427 = sst [smem:[%s426]] %s425
      %s428 = sld [smem:[#allocation2 + $0x2]]
      %s429 = scalar_lea.smem [#allocation12], 2
      %430 = sst [smem:[%s429]] %s428
    $region37: #{tpu_custom_call.1} parent=1 // pred_fallthru
      _
    // Predicated region
    $region38: #{tpu_custom_call.1} parent=1 // pred_check
      _
    $region39: #{tpu_custom_call.1} parent=1 // pred_check_branch
      %432 = sbr.rel (0) target = $region41
    $region40: #{tpu_custom_call.1} parent=1 // pred_region
      %s434 = ssub.s32 16, 16
      %435 = vsyncadd [#allocation8], %s434
      %438 = dma.smem_to_hbm [#allocation12], 16, %s6, [#allocation8]
    $region41: #{tpu_custom_call.1} parent=1 // pred_fallthru
      _
    // Predicated region
    $region42: #{tpu_custom_call.1} parent=1 // pred_check
      _
    $region43: #{tpu_custom_call.1} parent=1 // pred_check_branch
      %440 = sbr.rel (0) target = $region45
    $region44: #{tpu_custom_call.1} parent=1 // pred_region
      %441 = dma.done [#allocation8], 16
    $region45: #{tpu_custom_call.1} parent=1 // pred_fallthru
      _
    %442 = sfence
    %443 = vsyncpa [#allocation7], 1
    %444 = vsyncpa [#allocation10], 1
    %445 = vsyncpa [#allocation8], 1

</llo_original>
